<compile_context>
chip_gen: v6e
topology: v6e:2x2x1
jax: 0.10.0
libtpu: 0.0.40
codegen_flags: <defaults>
</compile_context>

<pallas_src>
import numpy as np
import jax
import jax.numpy as jnp
from jax import lax
from jax.experimental import pallas as pl
from jax.experimental.pallas import tpu as pltpu


def _round_up(v, m):
    return -(-v // m) * m


def _make_random_pad_kernel(B, C, H, W, amount):
    Ho, Wo = H + amount, W + amount

    def kernel(kx_ref, ky_ref, inp_ref, out_ref):
        p = pl.program_id(0)

        # Zero the entire output block once; the per-sample copies below
        # overwrite the data interiors, borders stay zero.
        out_ref[...] = jnp.zeros(out_ref.shape, dtype=out_ref.dtype)

        def copy_sample(b, carry):
            idx = p * B + b
            kx = kx_ref[idx]          # left pad  = kx * amount  (lane/W axis)
            ky = ky_ref[idx]          # top  pad  = ky * amount  (sublane/H axis)

            if amount <= 2:
                # No crop possible: y in {0, ..., amount} <= Ho - H, so a single
                # dynamic sublane-offset store covers every case.
                y = ky * amount
                for kxv in range(amount):
                    xv = kxv * amount

                    @pl.when(kx == kxv)
                    def _(xv=xv):
                        out_ref[b, :, pl.ds(y, H), xv:xv + W] = inp_ref[b]
            else:
                # amount >= 3: the right/bottom pad can be negative (crop), so
                # keep static (ky, kx) branches with clamped extents.
                for kxv in range(amount):
                    xv = kxv * amount
                    w = min(W, Wo - xv)
                    if w <= 0:
                        continue                      # fully cropped in W
                    for kyv in range(amount):
                        yv = kyv * amount
                        h = min(H, Ho - yv)
                        if h <= 0:
                            continue                  # fully cropped in H

                        @pl.when(jnp.logical_and(kx == kxv, ky == kyv))
                        def _(xv=xv, w=w, yv=yv, h=h):
                            out_ref[b, :, yv:yv + h, xv:xv + w] = \
                                inp_ref[b, :, :h, :w]
            return carry

        lax.fori_loop(0, B, copy_sample, None, unroll=True)

    return kernel


def random_pad(x_nchw, xs, ys, amount, *, samples_per_step=8):
    """Pallas equivalent of RandomPad.forward given per-sample offsets xs/ys."""
    if amount <= 0:
        raise ValueError("amount must be >= 1")
    N, C, H, W = x_nchw.shape
    Ho, Wo = H + amount, W + amount
    dtype = x_nchw.dtype
    itemsize = jnp.dtype(dtype).itemsize

    xs = jnp.asarray(xs, jnp.int32)
    ys = jnp.asarray(ys, jnp.int32)
    # Offsets are multiples of `amount`; map to branch indices and clamp so a
    # malformed offset still selects a valid branch (never stale output).
    kx = jnp.clip(xs // amount, 0, amount - 1)
    ky = jnp.clip(ys // amount, 0, amount - 1)

    # Batch B samples per grid step (amortize step overhead, one big DMA),
    # but keep >= 2 grid steps when N > 1 so v7x can use both TensorCores.
    B = max(1, min(samples_per_step, max(1, N // 2)))
    n_steps = -(-N // B)
    N_pad = n_steps * B
    if N_pad != N:
        pad = N_pad - N
        x_nchw = jnp.concatenate(
            [x_nchw, jnp.zeros((pad, C, H, W), dtype)], axis=0)
        kx = jnp.concatenate([kx, jnp.zeros((pad,), jnp.int32)])
        ky = jnp.concatenate([ky, jnp.zeros((pad,), jnp.int32)])

    kernel = _make_random_pad_kernel(B, C, H, W, amount)

    # Pure data movement: tell XLA how many bytes this call touches.
    cost = pl.CostEstimate(
        flops=0, transcendentals=0,
        bytes_accessed=int(N_pad * C * (H * W + Ho * Wo) * itemsize))

    # VMEM budget: double-buffered in+out blocks, last two dims padded to the
    # (8, 128) tile grid (lane padding dominates for small W).
    def _padded_bytes(shape):
        *lead, s, l = shape
        return int(np.prod(lead, dtype=np.int64)) * _round_up(s, 8) * \
            _round_up(l, 128) * itemsize
    block_bytes = _padded_bytes((B, C, H, W)) + _padded_bytes((B, C, Ho, Wo))
    vmem_limit = int(min(64 * 2**20, max(32 * 2**20, 4 * block_bytes)))
    # TODO(synk): for very large images (per-sample C*H*W of several MiB) tile
    # H into a second grid axis to stay inside v7x's 64 MiB VMEM; unnecessary
    # at autoencoder-scale shapes.

    out = pl.pallas_call(
        kernel,
        out_shape=jax.ShapeDtypeStruct((N_pad, C, Ho, Wo), dtype),
        grid_spec=pltpu.PrefetchScalarGridSpec(
            num_scalar_prefetch=2,
            grid=(n_steps,),
            in_specs=[
                # Deeper pipelining (pipeline_mode=pl.Buffered(3)) could be
                # swept here once profiling shows exposed input DMA.
                pl.BlockSpec((B, C, H, W), lambda p, kx_r, ky_r: (p, 0, 0, 0)),
            ],
            out_specs=pl.BlockSpec(
                (B, C, Ho, Wo), lambda p, kx_r, ky_r: (p, 0, 0, 0)),
        ),
        compiler_params=pltpu.CompilerParams(
            dimension_semantics=("parallel",),
            vmem_limit_bytes=vmem_limit,
        ),
        cost_estimate=cost,
    )(kx, ky, x_nchw)

    return out[:N] if N_pad != N else out


def _reference(x_nchw, xs, ys, amount):
    # numpy replica of: torch.stack([F.pad(v, (x, amount-x, y, amount-y)) ...])
    x_np = np.asarray(x_nchw)
    N, C, H, W = x_np.shape
    Ho, Wo = H + amount, W + amount
    out = np.zeros((N, C, Ho, Wo), x_np.dtype)
    for b in range(N):
        xb, yb = int(xs[b]), int(ys[b])
        h = max(0, min(H, Ho - yb))
        w = max(0, min(W, Wo - xb))
        out[b, :, yb:yb + h, xb:xb + w] = x_np[b, :, :h, :w]
    return out


if __name__ == "__main__":
    amount = 2
    N, C, H, W = 8, 4, 16, 16

    key = jax.random.PRNGKey(0)
    x = jax.random.normal(key, (N, C, H, W), dtype=jnp.float32)

    # Per-sample pad offsets drawn on the host, mirroring the module's
    # `np.random.randint(0, amount, size=2 * N) * amount` draw.
    # TODO(synk): the original module uses the *global* numpy RNG state; a
    # seeded generator (the same seed the module constructs) is used here for
    # determinism.
    rng = np.random.default_rng(74514)
    draws = (rng.integers(0, amount, size=2 * N) * amount).astype(np.int32)
    xs, ys = np.split(draws, 2)

    out = jax.block_until_ready(random_pad(x, xs, ys, amount, samples_per_step=4))

    ref = _reference(x, xs, ys, amount)
    assert out.shape == (N, C, H + amount, W + amount)
    np.testing.assert_allclose(np.asarray(out), ref, rtol=0, atol=0)
    print("KERNEL_OK")
</pallas_src>

<mosaic_0001>
module attributes {stable_mosaic.version = 11 : i64} {
  func.func @kernel(%arg0: i32, %arg1: memref<8xi32, #tpu.memory_space<smem>>, %arg2: memref<8xi32, #tpu.memory_space<smem>>, %arg3: memref<4x4x16x16xf32, #tpu.memory_space<vmem>>, %arg4: memref<4x4x18x18xf32, #tpu.memory_space<vmem>>) attributes {dimension_semantics = [#tpu.dimension_semantics<parallel>], iteration_bounds = array<i64: 2>, scalar_prefetch = 2 : i64, scratch_operands = 0 : i64, tpu.core_type = #tpu.core_type<tc>, window_params = [{transform_indices = @transform_0, window_bounds = array<i64: 4, 4, 16, 16>}, {transform_indices = @transform_1, window_bounds = array<i64: 4, 4, 18, 18>}]} {
    %cst = arith.constant 0.000000e+00 : f32
    %0 = vector.broadcast %cst : f32 to vector<4x4x18x18xf32>
    %c0 = arith.constant 0 : index
    %c0_0 = arith.constant 0 : index
    %c0_1 = arith.constant 0 : index
    %c0_2 = arith.constant 0 : index
    %1 = vector.load %arg4[%c0, %c0_0, %c0_1, %c0_2] : memref<4x4x18x18xf32, #tpu.memory_space<vmem>>, vector<4x4x18x18xf32>
    tpu.vector_store %arg4[%c0, %c0_0, %c0_1, %c0_2], %0 {strides = array<i32>} : memref<4x4x18x18xf32, #tpu.memory_space<vmem>>, vector<4x4x18x18xf32>,
    %c0_i32 = arith.constant 0 : i32
    %c4_i32 = arith.constant 4 : i32
    %2 = arith.muli %arg0, %c4_i32 : i32
    %3 = arith.addi %2, %c0_i32 : i32
    %4 = arith.index_cast %3 : i32 to index
    %5 = memref.load %arg1[%4] : memref<8xi32, #tpu.memory_space<smem>>
    %6 = arith.index_cast %3 : i32 to index
    %7 = memref.load %arg2[%6] : memref<8xi32, #tpu.memory_space<smem>>
    %c2_i32 = arith.constant 2 : i32
    %8 = arith.muli %7, %c2_i32 : i32
    %c0_i32_3 = arith.constant 0 : i32
    %9 = arith.cmpi eq, %5, %c0_i32_3 : i32
    %10 = arith.extui %9 : i1 to i32
    %c0_i32_4 = arith.constant 0 : i32
    %11 = arith.cmpi ne, %10, %c0_i32_4 : i32
    scf.if %11 {
      %54 = arith.index_cast %c0_i32 : i32 to index
      %c0_27 = arith.constant 0 : index
      %c0_28 = arith.constant 0 : index
      %c0_29 = arith.constant 0 : index
      %55 = vector.load %arg3[%54, %c0_27, %c0_28, %c0_29] : memref<4x4x16x16xf32, #tpu.memory_space<vmem>>, vector<1x4x16x16xf32>
      %56 = vector.shape_cast %55 : vector<1x4x16x16xf32> to vector<4x16x16xf32>
      %57 = arith.index_cast %c0_i32 : i32 to index
      %c0_30 = arith.constant 0 : index
      %58 = arith.index_cast %8 : i32 to index
      %c0_31 = arith.constant 0 : index
      %59 = vector.load %arg4[%57, %c0_30, %58, %c0_31] : memref<4x4x18x18xf32, #tpu.memory_space<vmem>>, vector<1x4x16x16xf32>
      %60 = vector.shape_cast %59 : vector<1x4x16x16xf32> to vector<4x16x16xf32>
      %61 = vector.shape_cast %56 : vector<4x16x16xf32> to vector<1x4x16x16xf32>
      tpu.vector_store %arg4[%57, %c0_30, %58, %c0_31], %61 {strides = array<i32>} : memref<4x4x18x18xf32, #tpu.memory_space<vmem>>, vector<1x4x16x16xf32>,
    } else {
    }
    %c1_i32 = arith.constant 1 : i32
    %12 = arith.cmpi eq, %5, %c1_i32 : i32
    %13 = arith.extui %12 : i1 to i32
    %c0_i32_5 = arith.constant 0 : i32
    %14 = arith.cmpi ne, %13, %c0_i32_5 : i32
    scf.if %14 {
      %54 = arith.index_cast %c0_i32 : i32 to index
      %c0_27 = arith.constant 0 : index
      %c0_28 = arith.constant 0 : index
      %c0_29 = arith.constant 0 : index
      %55 = vector.load %arg3[%54, %c0_27, %c0_28, %c0_29] : memref<4x4x16x16xf32, #tpu.memory_space<vmem>>, vector<1x4x16x16xf32>
      %56 = vector.shape_cast %55 : vector<1x4x16x16xf32> to vector<4x16x16xf32>
      %57 = arith.index_cast %c0_i32 : i32 to index
      %c0_30 = arith.constant 0 : index
      %58 = arith.index_cast %8 : i32 to index
      %c2 = arith.constant 2 : index
      %59 = vector.load %arg4[%57, %c0_30, %58, %c2] : memref<4x4x18x18xf32, #tpu.memory_space<vmem>>, vector<1x4x16x16xf32>
      %60 = vector.shape_cast %59 : vector<1x4x16x16xf32> to vector<4x16x16xf32>
      %61 = vector.shape_cast %56 : vector<4x16x16xf32> to vector<1x4x16x16xf32>
      tpu.vector_store %arg4[%57, %c0_30, %58, %c2], %61 {strides = array<i32>} : memref<4x4x18x18xf32, #tpu.memory_space<vmem>>, vector<1x4x16x16xf32>,
    } else {
    }
    %c1_i32_6 = arith.constant 1 : i32
    %c4_i32_7 = arith.constant 4 : i32
    %15 = arith.muli %arg0, %c4_i32_7 : i32
    %16 = arith.addi %15, %c1_i32_6 : i32
    %17 = arith.index_cast %16 : i32 to index
    %18 = memref.load %arg1[%17] : memref<8xi32, #tpu.memory_space<smem>>
    %19 = arith.index_cast %16 : i32 to index
    %20 = memref.load %arg2[%19] : memref<8xi32, #tpu.memory_space<smem>>
    %c2_i32_8 = arith.constant 2 : i32
    %21 = arith.muli %20, %c2_i32_8 : i32
    %c0_i32_9 = arith.constant 0 : i32
    %22 = arith.cmpi eq, %18, %c0_i32_9 : i32
    %23 = arith.extui %22 : i1 to i32
    %c0_i32_10 = arith.constant 0 : i32
    %24 = arith.cmpi ne, %23, %c0_i32_10 : i32
    scf.if %24 {
      %54 = arith.index_cast %c1_i32_6 : i32 to index
      %c0_27 = arith.constant 0 : index
      %c0_28 = arith.constant 0 : index
      %c0_29 = arith.constant 0 : index
      %55 = vector.load %arg3[%54, %c0_27, %c0_28, %c0_29] : memref<4x4x16x16xf32, #tpu.memory_space<vmem>>, vector<1x4x16x16xf32>
      %56 = vector.shape_cast %55 : vector<1x4x16x16xf32> to vector<4x16x16xf32>
      %57 = arith.index_cast %c1_i32_6 : i32 to index
      %c0_30 = arith.constant 0 : index
      %58 = arith.index_cast %21 : i32 to index
      %c0_31 = arith.constant 0 : index
      %59 = vector.load %arg4[%57, %c0_30, %58, %c0_31] : memref<4x4x18x18xf32, #tpu.memory_space<vmem>>, vector<1x4x16x16xf32>
      %60 = vector.shape_cast %59 : vector<1x4x16x16xf32> to vector<4x16x16xf32>
      %61 = vector.shape_cast %56 : vector<4x16x16xf32> to vector<1x4x16x16xf32>
      tpu.vector_store %arg4[%57, %c0_30, %58, %c0_31], %61 {strides = array<i32>} : memref<4x4x18x18xf32, #tpu.memory_space<vmem>>, vector<1x4x16x16xf32>,
    } else {
    }
    %c1_i32_11 = arith.constant 1 : i32
    %25 = arith.cmpi eq, %18, %c1_i32_11 : i32
    %26 = arith.extui %25 : i1 to i32
    %c0_i32_12 = arith.constant 0 : i32
    %27 = arith.cmpi ne, %26, %c0_i32_12 : i32
    scf.if %27 {
      %54 = arith.index_cast %c1_i32_6 : i32 to index
      %c0_27 = arith.constant 0 : index
      %c0_28 = arith.constant 0 : index
      %c0_29 = arith.constant 0 : index
      %55 = vector.load %arg3[%54, %c0_27, %c0_28, %c0_29] : memref<4x4x16x16xf32, #tpu.memory_space<vmem>>, vector<1x4x16x16xf32>
      %56 = vector.shape_cast %55 : vector<1x4x16x16xf32> to vector<4x16x16xf32>
      %57 = arith.index_cast %c1_i32_6 : i32 to index
      %c0_30 = arith.constant 0 : index
      %58 = arith.index_cast %21 : i32 to index
      %c2 = arith.constant 2 : index
      %59 = vector.load %arg4[%57, %c0_30, %58, %c2] : memref<4x4x18x18xf32, #tpu.memory_space<vmem>>, vector<1x4x16x16xf32>
      %60 = vector.shape_cast %59 : vector<1x4x16x16xf32> to vector<4x16x16xf32>
      %61 = vector.shape_cast %56 : vector<4x16x16xf32> to vector<1x4x16x16xf32>
      tpu.vector_store %arg4[%57, %c0_30, %58, %c2], %61 {strides = array<i32>} : memref<4x4x18x18xf32, #tpu.memory_space<vmem>>, vector<1x4x16x16xf32>,
    } else {
    }
    %c2_i32_13 = arith.constant 2 : i32
    %c4_i32_14 = arith.constant 4 : i32
    %28 = arith.muli %arg0, %c4_i32_14 : i32
    %29 = arith.addi %28, %c2_i32_13 : i32
    %30 = arith.index_cast %29 : i32 to index
    %31 = memref.load %arg1[%30] : memref<8xi32, #tpu.memory_space<smem>>
    %32 = arith.index_cast %29 : i32 to index
    %33 = memref.load %arg2[%32] : memref<8xi32, #tpu.memory_space<smem>>
    %c2_i32_15 = arith.constant 2 : i32
    %34 = arith.muli %33, %c2_i32_15 : i32
    %c0_i32_16 = arith.constant 0 : i32
    %35 = arith.cmpi eq, %31, %c0_i32_16 : i32
    %36 = arith.extui %35 : i1 to i32
    %c0_i32_17 = arith.constant 0 : i32
    %37 = arith.cmpi ne, %36, %c0_i32_17 : i32
    scf.if %37 {
      %54 = arith.index_cast %c2_i32_13 : i32 to index
      %c0_27 = arith.constant 0 : index
      %c0_28 = arith.constant 0 : index
      %c0_29 = arith.constant 0 : index
      %55 = vector.load %arg3[%54, %c0_27, %c0_28, %c0_29] : memref<4x4x16x16xf32, #tpu.memory_space<vmem>>, vector<1x4x16x16xf32>
      %56 = vector.shape_cast %55 : vector<1x4x16x16xf32> to vector<4x16x16xf32>
      %57 = arith.index_cast %c2_i32_13 : i32 to index
      %c0_30 = arith.constant 0 : index
      %58 = arith.index_cast %34 : i32 to index
      %c0_31 = arith.constant 0 : index
      %59 = vector.load %arg4[%57, %c0_30, %58, %c0_31] : memref<4x4x18x18xf32, #tpu.memory_space<vmem>>, vector<1x4x16x16xf32>
      %60 = vector.shape_cast %59 : vector<1x4x16x16xf32> to vector<4x16x16xf32>
      %61 = vector.shape_cast %56 : vector<4x16x16xf32> to vector<1x4x16x16xf32>
      tpu.vector_store %arg4[%57, %c0_30, %58, %c0_31], %61 {strides = array<i32>} : memref<4x4x18x18xf32, #tpu.memory_space<vmem>>, vector<1x4x16x16xf32>,
    } else {
    }
    %c1_i32_18 = arith.constant 1 : i32
    %38 = arith.cmpi eq, %31, %c1_i32_18 : i32
    %39 = arith.extui %38 : i1 to i32
    %c0_i32_19 = arith.constant 0 : i32
    %40 = arith.cmpi ne, %39, %c0_i32_19 : i32
    scf.if %40 {
      %54 = arith.index_cast %c2_i32_13 : i32 to index
      %c0_27 = arith.constant 0 : index
      %c0_28 = arith.constant 0 : index
      %c0_29 = arith.constant 0 : index
      %55 = vector.load %arg3[%54, %c0_27, %c0_28, %c0_29] : memref<4x4x16x16xf32, #tpu.memory_space<vmem>>, vector<1x4x16x16xf32>
      %56 = vector.shape_cast %55 : vector<1x4x16x16xf32> to vector<4x16x16xf32>
      %57 = arith.index_cast %c2_i32_13 : i32 to index
      %c0_30 = arith.constant 0 : index
      %58 = arith.index_cast %34 : i32 to index
      %c2 = arith.constant 2 : index
      %59 = vector.load %arg4[%57, %c0_30, %58, %c2] : memref<4x4x18x18xf32, #tpu.memory_space<vmem>>, vector<1x4x16x16xf32>
      %60 = vector.shape_cast %59 : vector<1x4x16x16xf32> to vector<4x16x16xf32>
      %61 = vector.shape_cast %56 : vector<4x16x16xf32> to vector<1x4x16x16xf32>
      tpu.vector_store %arg4[%57, %c0_30, %58, %c2], %61 {strides = array<i32>} : memref<4x4x18x18xf32, #tpu.memory_space<vmem>>, vector<1x4x16x16xf32>,
    } else {
    }
    %c3_i32 = arith.constant 3 : i32
    %c4_i32_20 = arith.constant 4 : i32
    %41 = arith.muli %arg0, %c4_i32_20 : i32
    %42 = arith.addi %41, %c3_i32 : i32
    %43 = arith.index_cast %42 : i32 to index
    %44 = memref.load %arg1[%43] : memref<8xi32, #tpu.memory_space<smem>>
    %45 = arith.index_cast %42 : i32 to index
    %46 = memref.load %arg2[%45] : memref<8xi32, #tpu.memory_space<smem>>
    %c2_i32_21 = arith.constant 2 : i32
    %47 = arith.muli %46, %c2_i32_21 : i32
    %c0_i32_22 = arith.constant 0 : i32
    %48 = arith.cmpi eq, %44, %c0_i32_22 : i32
    %49 = arith.extui %48 : i1 to i32
    %c0_i32_23 = arith.constant 0 : i32
    %50 = arith.cmpi ne, %49, %c0_i32_23 : i32
    scf.if %50 {
      %54 = arith.index_cast %c3_i32 : i32 to index
      %c0_27 = arith.constant 0 : index
      %c0_28 = arith.constant 0 : index
      %c0_29 = arith.constant 0 : index
      %55 = vector.load %arg3[%54, %c0_27, %c0_28, %c0_29] : memref<4x4x16x16xf32, #tpu.memory_space<vmem>>, vector<1x4x16x16xf32>
      %56 = vector.shape_cast %55 : vector<1x4x16x16xf32> to vector<4x16x16xf32>
      %57 = arith.index_cast %c3_i32 : i32 to index
      %c0_30 = arith.constant 0 : index
      %58 = arith.index_cast %47 : i32 to index
      %c0_31 = arith.constant 0 : index
      %59 = vector.load %arg4[%57, %c0_30, %58, %c0_31] : memref<4x4x18x18xf32, #tpu.memory_space<vmem>>, vector<1x4x16x16xf32>
      %60 = vector.shape_cast %59 : vector<1x4x16x16xf32> to vector<4x16x16xf32>
      %61 = vector.shape_cast %56 : vector<4x16x16xf32> to vector<1x4x16x16xf32>
      tpu.vector_store %arg4[%57, %c0_30, %58, %c0_31], %61 {strides = array<i32>} : memref<4x4x18x18xf32, #tpu.memory_space<vmem>>, vector<1x4x16x16xf32>,
    } else {
    }
    %c1_i32_24 = arith.constant 1 : i32
    %51 = arith.cmpi eq, %44, %c1_i32_24 : i32
    %52 = arith.extui %51 : i1 to i32
    %c0_i32_25 = arith.constant 0 : i32
    %53 = arith.cmpi ne, %52, %c0_i32_25 : i32
    scf.if %53 {
      %54 = arith.index_cast %c3_i32 : i32 to index
      %c0_27 = arith.constant 0 : index
      %c0_28 = arith.constant 0 : index
      %c0_29 = arith.constant 0 : index
      %55 = vector.load %arg3[%54, %c0_27, %c0_28, %c0_29] : memref<4x4x16x16xf32, #tpu.memory_space<vmem>>, vector<1x4x16x16xf32>
      %56 = vector.shape_cast %55 : vector<1x4x16x16xf32> to vector<4x16x16xf32>
      %57 = arith.index_cast %c3_i32 : i32 to index
      %c0_30 = arith.constant 0 : index
      %58 = arith.index_cast %47 : i32 to index
      %c2 = arith.constant 2 : index
      %59 = vector.load %arg4[%57, %c0_30, %58, %c2] : memref<4x4x18x18xf32, #tpu.memory_space<vmem>>, vector<1x4x16x16xf32>
      %60 = vector.shape_cast %59 : vector<1x4x16x16xf32> to vector<4x16x16xf32>
      %61 = vector.shape_cast %56 : vector<4x16x16xf32> to vector<1x4x16x16xf32>
      tpu.vector_store %arg4[%57, %c0_30, %58, %c2], %61 {strides = array<i32>} : memref<4x4x18x18xf32, #tpu.memory_space<vmem>>, vector<1x4x16x16xf32>,
    } else {
    }
    %c4_i32_26 = arith.constant 4 : i32
    return
  }
  func.func @transform_0(%arg0: i32, %arg1: memref<8xi32, #tpu.memory_space<smem>>, %arg2: memref<8xi32, #tpu.memory_space<smem>>) -> (i32, i32, i32, i32) {
    %c0_i32 = arith.constant 0 : i32
    %c0_i32_0 = arith.constant 0 : i32
    %c0_i32_1 = arith.constant 0 : i32
    %c0_i32_2 = arith.constant 0 : i32
    return %arg0, %c0_i32, %c0_i32_0, %c0_i32_1 : i32, i32, i32, i32
  }
  func.func @transform_1(%arg0: i32, %arg1: memref<8xi32, #tpu.memory_space<smem>>, %arg2: memref<8xi32, #tpu.memory_space<smem>>) -> (i32, i32, i32, i32) {
    %c0_i32 = arith.constant 0 : i32
    %c0_i32_0 = arith.constant 0 : i32
    %c0_i32_1 = arith.constant 0 : i32
    %c0_i32_2 = arith.constant 0 : i32
    return %arg0, %c0_i32, %c0_i32_0, %c0_i32_1 : i32, i32, i32, i32
  }
}

</mosaic_0001>

<llo_original>
// kernel: tpu_custom_call.1
$region0: #{tpu_custom_call.1}
  #allocation0 [shape = 'u32[]', space=smem, size = 0x4, offset = 0x4, fixed_abs, tag = 'smem constant byte address 0x4 - core index']
  #allocation1 [shape = 'u32[144,128]{1,0:T(1,128)}', space=vmem, size = 0x12000, scoped, tag = 'internal scratch']
  #allocation2 [shape = 's32[1]{0}', space=sflag, size = 0x4, scoped, tag = 'scoped memory for tpu_custom_call.1']
  #allocation3 [shape = 'u8[512]{0}', space=smem, size = 0x200, scoped, tag = 'prefetched SMEM operand 0']
  #allocation4 [shape = 'u8[512]{0}', space=smem, size = 0x200, scoped, tag = 'prefetched SMEM operand 1']
  %s0 = inlined_call_operand.hbm [shape: s32[8], index: 0, kind: input, shape index: {}]
  %s1 = inlined_call_operand.vmem [shape: s32[8], index: 1, kind: input, shape index: {}]
  %s2 = inlined_call_operand.hbm [shape: f32[8,4,16,16], index: 2, kind: input, shape index: {}]
  %s3 = inlined_call_operand.vmem [shape: f32[8,4,18,18], index: 3, kind: output, shape index: {}]
  %s4 = sld [smem:[#allocation0]]
  $region73: #{tpu_custom_call.1} parent=0
    _
  %s6 = ssub.s32 1, %s4
  %s7 = scalar_select 0, %s6, %s4
  %9 = dma.hbm_to_smem %s0, 16, [#allocation3], [#allocation2]
  %s10 = sshll.u32 %s1, 4
  %s11 = int_to_ptr.vmem [resolvable:$true] %s10
  %13 = dma.vmem_to_smem %s11, 16, [#allocation4], [#allocation2]
  %14 = dma.done [#allocation2], 32
  %15 = sfence
  $region1: #{tpu_custom_call.1} parent=0
    #allocation5 [shape = 'u8[262144]{0}', space=vmem, size = 0x40000, scoped, tag = 'input window, operand 2']
    #allocation6 [shape = 's32[2]{0}', space=sflag, size = 0x8, scoped, tag = 'scoped memory for tpu_custom_call.1']
    %16 = vsyncpa [#allocation6], 0
    %s17 = scalar_lea.sflag [#allocation6], 1
    %18 = vsyncpa %s17, 0
    loop: start=0, step=1, limit=4
    $region2: #{tpu_custom_call.1} parent=1 // loop_pre_header
      _
    $region3: #{tpu_custom_call.1} parent=1 // loop_header
      %s20 = sphi 0, %s24
      %p21 = scmp.ge.s32.totalorder %s20, 4
      %s30 = sphi 0, %s32
      %s33 = sphi 0, %s30
      %s34 = sphi 0, %s33
      %s50 = sphi 0, %s34
      %s56 = sphi 0, %s58
      %s59 = sphi 0, %s56
      %s60 = sphi 0, %s59
      %s76 = sphi 0, %s60
    $region4: #{tpu_custom_call.1} parent=1 // loop_header_branch
      %23 = sbr.rel (%p21) target = $region8
    $region5: #{tpu_custom_call.1} parent=1 // loop_body
      %s25 = ssub.s32 %s20, 1
      %s26 = ssub.s32 %s20, 2
      %s27 = sadd.s32 %s20, 1
      %s28 = ssub.s32 %s20, %s27
      %p29 = scmp.eq.s32.totalorder %s28, 0
      %s31 = sadd.s32 %s30, 1
      %s32 = scalar_select %p29, %s30, %s31
      %p35 = pneg %p29
      %p36 = scmp.eq.s32.totalorder %s20, 1
      %p37 = por %p35, %p36
      %p38 = scmp.ne.s32.totalorder %s30, %s33
      %p39 = scmp.eq.s32.totalorder %s20, 0
      %p40 = por %p38, %p39
      %p41 = scmp.ne.s32.totalorder %s30, %s33
      %p42 = scmp.eq.s32.totalorder %s25, 1
      %p43 = por %p41, %p42
      %p44 = scmp.ne.s32.totalorder %s33, %s34
      %p45 = scmp.eq.s32.totalorder %s25, 0
      %p46 = por %p44, %p45
      %p47 = scmp.ne.s32.totalorder %s33, %s34
      %p48 = scmp.eq.s32.totalorder %s26, 1
      %p49 = por %p47, %p48
      %p51 = scmp.ne.s32.totalorder %s34, %s50
      %p52 = scmp.eq.s32.totalorder %s26, 0
      %p53 = por %p51, %p52
      %s54 = ssub.s32 %s20, %s27
      %p55 = scmp.eq.s32.totalorder %s54, 0
      %s57 = sadd.s32 %s56, 1
      %s58 = scalar_select %p55, %s56, %s57
      %p61 = pneg %p55
      %p62 = scmp.eq.s32.totalorder %s20, 1
      %p63 = por %p61, %p62
      %p64 = scmp.ne.s32.totalorder %s56, %s59
      %p65 = scmp.eq.s32.totalorder %s20, 0
      %p66 = por %p64, %p65
      %p67 = scmp.ne.s32.totalorder %s56, %s59
      %p68 = scmp.eq.s32.totalorder %s25, 1
      %p69 = por %p67, %p68
      %p70 = scmp.ne.s32.totalorder %s59, %s60
      %p71 = scmp.eq.s32.totalorder %s25, 0
      %p72 = por %p70, %p71
      %p73 = scmp.ne.s32.totalorder %s59, %s60
      %p74 = scmp.eq.s32.totalorder %s26, 1
      %p75 = por %p73, %p74
      %p77 = scmp.ne.s32.totalorder %s60, %s76
      %p78 = scmp.eq.s32.totalorder %s26, 0
      %p79 = por %p77, %p78
      %p80 = scmp.le.s32.totalorder 1, %s20
      %p81 = scmp.lt.s32.totalorder %s20, 3
      %p82 = pnand %p80, %p81
      %p83 = pneg %p82
      // Predicated region
      $region9: #{tpu_custom_call.1} parent=5 // pred_check
        _
      $region10: #{tpu_custom_call.1} parent=5 // pred_check_branch
        %85 = sbr.rel (%p82) target = $region12
      $region11: #{tpu_custom_call.1} parent=5 // pred_region
        %s86 = ssub.s32 %s20, 1
      $region12: #{tpu_custom_call.1} parent=5 // pred_fallthru
        _
      %p87 = scmp.lt.s32.totalorder %s20, 2
      // Predicated region
      $region13: #{tpu_custom_call.1} parent=5 // pred_check
        %p88 = pneg %p87
      $region14: #{tpu_custom_call.1} parent=5 // pred_check_branch
        %90 = sbr.rel (%p88) target = $region16
      $region15: #{tpu_custom_call.1} parent=5 // pred_region
        // Predicated region
        $region17: #{tpu_custom_call.1} parent=15 // pred_check
          %p91 = pneg %p40
        $region18: #{tpu_custom_call.1} parent=15 // pred_check_branch
          %93 = sbr.rel (%p91) target = $region20
        $region19: #{tpu_custom_call.1} parent=15 // pred_region
          %s94 = sand.u32 %s30, 1
          %s95 = scalar_lea.sflag [#allocation6], %s94
          %s96 = sand.u32 %s30, 1
          %s97 = smul.addr %s96, 256
          %s98 = scalar_lea.vmem [#allocation5], %s97
          %s99 = smul.u32 4, %s20
          %s101 = ssub.s32 4096, 4096
          %102 = vsyncadd %s95, %s101
          %s103 = smul.addr %s99, 8
          %s104 = smul.addr %s103, 128
          %s105 = scalar_lea.hbm %s2, %s104
          %s106 = sshll.u32 %s98, 4
          %s107 = int_to_ptr.vmem [resolvable:$true] %s106
          %112 = dma.hbm_to_vmem [thread:$0]  %s105, 4096, %s107, %s95, 128, 128, 8
        $region20: #{tpu_custom_call.1} parent=15 // pred_fallthru
          _
      $region16: #{tpu_custom_call.1} parent=5 // pred_fallthru
        _
      %p113 = scmp.le.s32.totalorder 1, %s20
      %p114 = scmp.lt.s32.totalorder %s20, 3
      %p115 = pnand %p113, %p114
      %p116 = pneg %p115
      // Predicated region
      $region21: #{tpu_custom_call.1} parent=5 // pred_check
        _
      $region22: #{tpu_custom_call.1} parent=5 // pred_check_branch
        %118 = sbr.rel (%p115) target = $region24
      $region23: #{tpu_custom_call.1} parent=5 // pred_region
        %s119 = ssub.s32 %s20, 1
        %s120 = sand.u32 %s33, 1
        %s121 = scalar_lea.sflag [#allocation6], %s120
        %s122 = sand.u32 %s33, 1
        %s123 = smul.addr %s122, 256
        %s124 = scalar_lea.vmem [#allocation5], %s123
        // Predicated region
        $region25: #{tpu_custom_call.1} parent=23 // pred_check
          %p125 = pneg %p46
        $region26: #{tpu_custom_call.1} parent=23 // pred_check_branch
          %127 = sbr.rel (%p125) target = $region28
        $region27: #{tpu_custom_call.1} parent=23 // pred_region
          %128 = dma.done %s121, 4096
        $region28: #{tpu_custom_call.1} parent=23 // pred_fallthru
          _
        %s129 = sand.u32 %s33, 1
        %s130 = scalar_lea.sflag [#allocation6], %s129
        %s131 = sand.u32 %s33, 1
        %s132 = smul.addr %s131, 256
        %s133 = scalar_lea.vmem [#allocation5], %s132
        %p134 = pneg %p46
        %p135 = pneg %p43
        %p136 = pneg %p72
        %p137 = pneg %p69
        %s138 = smul.u32 4, %s25
        %p139 = scmp.lt.s32.totalorder %s138, 7
        %s140 = scalar_select %p139, %s138, 7
        %s141 = smul.addr %s140, 12
        %s142 = smul.addr %s141, 8
        %s143 = scalar_lea.vmem %s3, %s142
        %s144 = smul.u32 4, %s25
        %s145 = smul.u32 4, %s25
        %p146 = scmp.lt.s32.totalorder %s145, 7
        %s147 = scalar_select %p146, %s145, 7
        %s148 = smul.addr %s147, 12
        %s149 = smul.addr %s148, 8
        %s150 = scalar_lea.vmem %s3, %s149
        %s151 = smul.u32 4, %s25
        %vm152 = vcmask 146432
        %153 = vst.msk [vmem:[%s150] sm:$0xff] %vm152, 0.0
        %154 = vst.msk [vmem:[%s150 + $0x8] sm:$0xff] %vm152, 0.0
        %vm155 = vcmask 140288
        %156 = vst.msk [vmem:[%s150 + $0x10] sm:$0x3] %vm155, 0.0
        %157 = vst.msk [vmem:[%s150 + $0x18] sm:$0xff] %vm152, 0.0
        %158 = vst.msk [vmem:[%s150 + $0x20] sm:$0xff] %vm152, 0.0
        %159 = vst.msk [vmem:[%s150 + $0x28] sm:$0x3] %vm155, 0.0
        %160 = vst.msk [vmem:[%s150 + $0x30] sm:$0xff] %vm152, 0.0
        %161 = vst.msk [vmem:[%s150 + $0x38] sm:$0xff] %vm152, 0.0
        %162 = vst.msk [vmem:[%s150 + $0x40] sm:$0x3] %vm155, 0.0
        %163 = vst.msk [vmem:[%s150 + $0x48] sm:$0xff] %vm152, 0.0
        %164 = vst.msk [vmem:[%s150 + $0x50] sm:$0xff] %vm152, 0.0
        %165 = vst.msk [vmem:[%s150 + $0x58] sm:$0x3] %vm155, 0.0
        %166 = vst.msk [vmem:[%s150 + $0x60] sm:$0xff] %vm152, 0.0
        %167 = vst.msk [vmem:[%s150 + $0x68] sm:$0xff] %vm152, 0.0
        %168 = vst.msk [vmem:[%s150 + $0x70] sm:$0x3] %vm155, 0.0
        %169 = vst.msk [vmem:[%s150 + $0x78] sm:$0xff] %vm152, 0.0
        %170 = vst.msk [vmem:[%s150 + $0x80] sm:$0xff] %vm152, 0.0
        %171 = vst.msk [vmem:[%s150 + $0x88] sm:$0x3] %vm155, 0.0
        %172 = vst.msk [vmem:[%s150 + $0x90] sm:$0xff] %vm152, 0.0
        %173 = vst.msk [vmem:[%s150 + $0x98] sm:$0xff] %vm152, 0.0
        %174 = vst.msk [vmem:[%s150 + $0xa0] sm:$0x3] %vm155, 0.0
        %175 = vst.msk [vmem:[%s150 + $0xa8] sm:$0xff] %vm152, 0.0
        %176 = vst.msk [vmem:[%s150 + $0xb0] sm:$0xff] %vm152, 0.0
        %177 = vst.msk [vmem:[%s150 + $0xb8] sm:$0x3] %vm155, 0.0
        %178 = vst.msk [vmem:[%s150 + $0xc0] sm:$0xff] %vm152, 0.0
        %179 = vst.msk [vmem:[%s150 + $0xc8] sm:$0xff] %vm152, 0.0
        %180 = vst.msk [vmem:[%s150 + $0xd0] sm:$0x3] %vm155, 0.0
        %181 = vst.msk [vmem:[%s150 + $0xd8] sm:$0xff] %vm152, 0.0
        %182 = vst.msk [vmem:[%s150 + $0xe0] sm:$0xff] %vm152, 0.0
        %183 = vst.msk [vmem:[%s150 + $0xe8] sm:$0x3] %vm155, 0.0
        %184 = vst.msk [vmem:[%s150 + $0xf0] sm:$0xff] %vm152, 0.0
        %185 = vst.msk [vmem:[%s150 + $0xf8] sm:$0xff] %vm152, 0.0
        %186 = vst.msk [vmem:[%s150 + $0x100] sm:$0x3] %vm155, 0.0
        %187 = vst.msk [vmem:[%s150 + $0x108] sm:$0xff] %vm152, 0.0
        %188 = vst.msk [vmem:[%s150 + $0x110] sm:$0xff] %vm152, 0.0
        %189 = vst.msk [vmem:[%s150 + $0x118] sm:$0x3] %vm155, 0.0
        %190 = vst.msk [vmem:[%s150 + $0x120] sm:$0xff] %vm152, 0.0
        %191 = vst.msk [vmem:[%s150 + $0x128] sm:$0xff] %vm152, 0.0
        %192 = vst.msk [vmem:[%s150 + $0x130] sm:$0x3] %vm155, 0.0
        %193 = vst.msk [vmem:[%s150 + $0x138] sm:$0xff] %vm152, 0.0
        %194 = vst.msk [vmem:[%s150 + $0x140] sm:$0xff] %vm152, 0.0
        %195 = vst.msk [vmem:[%s150 + $0x148] sm:$0x3] %vm155, 0.0
        %196 = vst.msk [vmem:[%s150 + $0x150] sm:$0xff] %vm152, 0.0
        %197 = vst.msk [vmem:[%s150 + $0x158] sm:$0xff] %vm152, 0.0
        %198 = vst.msk [vmem:[%s150 + $0x160] sm:$0x3] %vm155, 0.0
        %199 = vst.msk [vmem:[%s150 + $0x168] sm:$0xff] %vm152, 0.0
        %200 = vst.msk [vmem:[%s150 + $0x170] sm:$0xff] %vm152, 0.0
        %201 = vst.msk [vmem:[%s150 + $0x178] sm:$0x3] %vm155, 0.0
        %s202 = smul.u32 %s25, 4
        %s203 = sld [smem:[#allocation3 + %s202]]
        %s204 = sld [smem:[#allocation4 + %s202]]
        %s205 = smul.u32 %s204, 2
        %p206 = scmp.eq.s32.totalorder %s203, 0
        // Predicated region
        $region29: #{tpu_custom_call.1} parent=23 // pred_check
          %p207 = pneg %p206
        $region30: #{tpu_custom_call.1} parent=23 // pred_check_branch
          %209 = sbr.rel (%p207) target = $region32
        $region31: #{tpu_custom_call.1} parent=23 // pred_region
          %v210 = vld [vmem:[%s124] sm:$0xff]
          %v211 = vld [vmem:[%s124 + $0x8] sm:$0xff]
          %v212 = vld [vmem:[%s124 + $0x10] sm:$0xff]
          %v213 = vld [vmem:[%s124 + $0x18] sm:$0xff]
          %v214 = vld [vmem:[%s124 + $0x20] sm:$0xff]
          %v215 = vld [vmem:[%s124 + $0x28] sm:$0xff]
          %v216 = vld [vmem:[%s124 + $0x30] sm:$0xff]
          %v217 = vld [vmem:[%s124 + $0x38] sm:$0xff]
          %s218 = scalar_lea.vmem %s150, %s205
          %vm219 = vcmask 130048
          %220 = vst.msk [vmem:[%s218] sm:$0xff] %vm219, %v210
          %221 = vst.msk [vmem:[%s218 + $0x8] sm:$0xff] %vm219, %v211
          %222 = vst.msk [vmem:[%s218 + $0x18] sm:$0xff] %vm219, %v212
          %223 = vst.msk [vmem:[%s218 + $0x20] sm:$0xff] %vm219, %v213
          %224 = vst.msk [vmem:[%s218 + $0x30] sm:$0xff] %vm219, %v214
          %225 = vst.msk [vmem:[%s218 + $0x38] sm:$0xff] %vm219, %v215
          %226 = vst.msk [vmem:[%s218 + $0x48] sm:$0xff] %vm219, %v216
          %227 = vst.msk [vmem:[%s218 + $0x50] sm:$0xff] %vm219, %v217
        $region32: #{tpu_custom_call.1} parent=23 // pred_fallthru
          _
        %p228 = scmp.eq.s32.totalorder %s203, 1
        // Predicated region
        $region33: #{tpu_custom_call.1} parent=23 // pred_check
          %p229 = pneg %p228
        $region34: #{tpu_custom_call.1} parent=23 // pred_check_branch
          %231 = sbr.rel (%p229) target = $region36
        $region35: #{tpu_custom_call.1} parent=23 // pred_region
          %v232 = vld [vmem:[%s124] sm:$0xff]
          %v233 = vld [vmem:[%s124 + $0x8] sm:$0xff]
          %v234 = vld [vmem:[%s124 + $0x10] sm:$0xff]
          %v235 = vld [vmem:[%s124 + $0x18] sm:$0xff]
          %v236 = vld [vmem:[%s124 + $0x20] sm:$0xff]
          %v237 = vld [vmem:[%s124 + $0x28] sm:$0xff]
          %v238 = vld [vmem:[%s124 + $0x30] sm:$0xff]
          %v239 = vld [vmem:[%s124 + $0x38] sm:$0xff]
          %248 = vrot.lane.b32.xlu0 %v232, 2
          %v249 = vpop.permute.xlu0 %248
          %250 = vrot.lane.b32.xlu0 %v233, 2
          %v251 = vpop.permute.xlu0 %250
          %252 = vrot.lane.b32.xlu0 %v234, 2
          %v253 = vpop.permute.xlu0 %252
          %254 = vrot.lane.b32.xlu0 %v235, 2
          %v255 = vpop.permute.xlu0 %254
          %256 = vrot.lane.b32.xlu0 %v236, 2
          %v257 = vpop.permute.xlu0 %256
          %258 = vrot.lane.b32.xlu0 %v237, 2
          %v259 = vpop.permute.xlu0 %258
          %260 = vrot.lane.b32.xlu0 %v238, 2
          %v261 = vpop.permute.xlu0 %260
          %262 = vrot.lane.b32.xlu0 %v239, 2
          %v263 = vpop.permute.xlu0 %262
          %s272 = scalar_lea.vmem %s150, %s205
          %vm273 = vcmask 146448
          %274 = vst.msk [vmem:[%s272] sm:$0xff] %vm273, %v249
          %275 = vst.msk [vmem:[%s272 + $0x8] sm:$0xff] %vm273, %v251
          %276 = vst.msk [vmem:[%s272 + $0x18] sm:$0xff] %vm273, %v253
          %277 = vst.msk [vmem:[%s272 + $0x20] sm:$0xff] %vm273, %v255
          %278 = vst.msk [vmem:[%s272 + $0x30] sm:$0xff] %vm273, %v257
          %279 = vst.msk [vmem:[%s272 + $0x38] sm:$0xff] %vm273, %v259
          %280 = vst.msk [vmem:[%s272 + $0x48] sm:$0xff] %vm273, %v261
          %281 = vst.msk [vmem:[%s272 + $0x50] sm:$0xff] %vm273, %v263
        $region36: #{tpu_custom_call.1} parent=23 // pred_fallthru
          _
        %s282 = sadd.s32 %s202, 1
        %s283 = sld [smem:[#allocation3 + %s282]]
        %s284 = sld [smem:[#allocation4 + %s282]]
        %s285 = smul.u32 %s284, 2
        %p286 = scmp.eq.s32.totalorder %s283, 0
        // Predicated region
        $region37: #{tpu_custom_call.1} parent=23 // pred_check
          %p287 = pneg %p286
        $region38: #{tpu_custom_call.1} parent=23 // pred_check_branch
          %289 = sbr.rel (%p287) target = $region40
        $region39: #{tpu_custom_call.1} parent=23 // pred_region
          %s290 = scalar_lea.vmem %s124, 64 [#allocation5]
          %v291 = vld [vmem:[%s290] sm:$0xff]
          %v292 = vld [vmem:[%s290 + $0x8] sm:$0xff]
          %v293 = vld [vmem:[%s290 + $0x10] sm:$0xff]
          %v294 = vld [vmem:[%s290 + $0x18] sm:$0xff]
          %v295 = vld [vmem:[%s290 + $0x20] sm:$0xff]
          %v296 = vld [vmem:[%s290 + $0x28] sm:$0xff]
          %v297 = vld [vmem:[%s290 + $0x30] sm:$0xff]
          %v298 = vld [vmem:[%s290 + $0x38] sm:$0xff]
          %s299 = sadd.s32 %s285, 96
          %s300 = scalar_lea.vmem %s150, %s299
          %vm301 = vcmask 130048
          %302 = vst.msk [vmem:[%s300] sm:$0xff] %vm301, %v291
          %303 = vst.msk [vmem:[%s300 + $0x8] sm:$0xff] %vm301, %v292
          %304 = vst.msk [vmem:[%s300 + $0x18] sm:$0xff] %vm301, %v293
          %305 = vst.msk [vmem:[%s300 + $0x20] sm:$0xff] %vm301, %v294
          %306 = vst.msk [vmem:[%s300 + $0x30] sm:$0xff] %vm301, %v295
          %307 = vst.msk [vmem:[%s300 + $0x38] sm:$0xff] %vm301, %v296
          %308 = vst.msk [vmem:[%s300 + $0x48] sm:$0xff] %vm301, %v297
          %309 = vst.msk [vmem:[%s300 + $0x50] sm:$0xff] %vm301, %v298
        $region40: #{tpu_custom_call.1} parent=23 // pred_fallthru
          _
        %p310 = scmp.eq.s32.totalorder %s283, 1
        // Predicated region
        $region41: #{tpu_custom_call.1} parent=23 // pred_check
          %p311 = pneg %p310
        $region42: #{tpu_custom_call.1} parent=23 // pred_check_branch
          %313 = sbr.rel (%p311) target = $region44
        $region43: #{tpu_custom_call.1} parent=23 // pred_region
          %s314 = scalar_lea.vmem %s124, 64 [#allocation5]
          %v315 = vld [vmem:[%s314] sm:$0xff]
          %v316 = vld [vmem:[%s314 + $0x8] sm:$0xff]
          %v317 = vld [vmem:[%s314 + $0x10] sm:$0xff]
          %v318 = vld [vmem:[%s314 + $0x18] sm:$0xff]
          %v319 = vld [vmem:[%s314 + $0x20] sm:$0xff]
          %v320 = vld [vmem:[%s314 + $0x28] sm:$0xff]
          %v321 = vld [vmem:[%s314 + $0x30] sm:$0xff]
          %v322 = vld [vmem:[%s314 + $0x38] sm:$0xff]
          %331 = vrot.lane.b32.xlu0 %v315, 2
          %v332 = vpop.permute.xlu0 %331
          %333 = vrot.lane.b32.xlu0 %v316, 2
          %v334 = vpop.permute.xlu0 %333
          %335 = vrot.lane.b32.xlu0 %v317, 2
          %v336 = vpop.permute.xlu0 %335
          %337 = vrot.lane.b32.xlu0 %v318, 2
          %v338 = vpop.permute.xlu0 %337
          %339 = vrot.lane.b32.xlu0 %v319, 2
          %v340 = vpop.permute.xlu0 %339
          %341 = vrot.lane.b32.xlu0 %v320, 2
          %v342 = vpop.permute.xlu0 %341
          %343 = vrot.lane.b32.xlu0 %v321, 2
          %v344 = vpop.permute.xlu0 %343
          %345 = vrot.lane.b32.xlu0 %v322, 2
          %v346 = vpop.permute.xlu0 %345
          %s355 = sadd.s32 %s285, 96
          %s356 = scalar_lea.vmem %s150, %s355
          %vm357 = vcmask 146448
          %358 = vst.msk [vmem:[%s356] sm:$0xff] %vm357, %v332
          %359 = vst.msk [vmem:[%s356 + $0x8] sm:$0xff] %vm357, %v334
          %360 = vst.msk [vmem:[%s356 + $0x18] sm:$0xff] %vm357, %v336
          %361 = vst.msk [vmem:[%s356 + $0x20] sm:$0xff] %vm357, %v338
          %362 = vst.msk [vmem:[%s356 + $0x30] sm:$0xff] %vm357, %v340
          %363 = vst.msk [vmem:[%s356 + $0x38] sm:$0xff] %vm357, %v342
          %364 = vst.msk [vmem:[%s356 + $0x48] sm:$0xff] %vm357, %v344
          %365 = vst.msk [vmem:[%s356 + $0x50] sm:$0xff] %vm357, %v346
        $region44: #{tpu_custom_call.1} parent=23 // pred_fallthru
          _
        %s366 = sadd.s32 %s202, 2
        %s367 = sld [smem:[#allocation3 + %s366]]
        %s368 = sld [smem:[#allocation4 + %s366]]
        %s369 = smul.u32 %s368, 2
        %p370 = scmp.eq.s32.totalorder %s367, 0
        // Predicated region
        $region45: #{tpu_custom_call.1} parent=23 // pred_check
          %p371 = pneg %p370
        $region46: #{tpu_custom_call.1} parent=23 // pred_check_branch
          %373 = sbr.rel (%p371) target = $region48
        $region47: #{tpu_custom_call.1} parent=23 // pred_region
          %s374 = scalar_lea.vmem %s124, 128 [#allocation5]
          %v375 = vld [vmem:[%s374] sm:$0xff]
          %v376 = vld [vmem:[%s374 + $0x8] sm:$0xff]
          %v377 = vld [vmem:[%s374 + $0x10] sm:$0xff]
          %v378 = vld [vmem:[%s374 + $0x18] sm:$0xff]
          %v379 = vld [vmem:[%s374 + $0x20] sm:$0xff]
          %v380 = vld [vmem:[%s374 + $0x28] sm:$0xff]
          %v381 = vld [vmem:[%s374 + $0x30] sm:$0xff]
          %v382 = vld [vmem:[%s374 + $0x38] sm:$0xff]
          %s383 = sadd.s32 %s369, 192
          %s384 = scalar_lea.vmem %s150, %s383
          %vm385 = vcmask 130048
          %386 = vst.msk [vmem:[%s384] sm:$0xff] %vm385, %v375
          %387 = vst.msk [vmem:[%s384 + $0x8] sm:$0xff] %vm385, %v376
          %388 = vst.msk [vmem:[%s384 + $0x18] sm:$0xff] %vm385, %v377
          %389 = vst.msk [vmem:[%s384 + $0x20] sm:$0xff] %vm385, %v378
          %390 = vst.msk [vmem:[%s384 + $0x30] sm:$0xff] %vm385, %v379
          %391 = vst.msk [vmem:[%s384 + $0x38] sm:$0xff] %vm385, %v380
          %392 = vst.msk [vmem:[%s384 + $0x48] sm:$0xff] %vm385, %v381
          %393 = vst.msk [vmem:[%s384 + $0x50] sm:$0xff] %vm385, %v382
        $region48: #{tpu_custom_call.1} parent=23 // pred_fallthru
          _
        %p394 = scmp.eq.s32.totalorder %s367, 1
        // Predicated region
        $region49: #{tpu_custom_call.1} parent=23 // pred_check
          %p395 = pneg %p394
        $region50: #{tpu_custom_call.1} parent=23 // pred_check_branch
          %397 = sbr.rel (%p395) target = $region52
        $region51: #{tpu_custom_call.1} parent=23 // pred_region
          %s398 = scalar_lea.vmem %s124, 128 [#allocation5]
          %v399 = vld [vmem:[%s398] sm:$0xff]
          %v400 = vld [vmem:[%s398 + $0x8] sm:$0xff]
          %v401 = vld [vmem:[%s398 + $0x10] sm:$0xff]
          %v402 = vld [vmem:[%s398 + $0x18] sm:$0xff]
          %v403 = vld [vmem:[%s398 + $0x20] sm:$0xff]
          %v404 = vld [vmem:[%s398 + $0x28] sm:$0xff]
          %v405 = vld [vmem:[%s398 + $0x30] sm:$0xff]
          %v406 = vld [vmem:[%s398 + $0x38] sm:$0xff]
          %415 = vrot.lane.b32.xlu0 %v399, 2
          %v416 = vpop.permute.xlu0 %415
          %417 = vrot.lane.b32.xlu0 %v400, 2
          %v418 = vpop.permute.xlu0 %417
          %419 = vrot.lane.b32.xlu0 %v401, 2
          %v420 = vpop.permute.xlu0 %419
          %421 = vrot.lane.b32.xlu0 %v402, 2
          %v422 = vpop.permute.xlu0 %421
          %423 = vrot.lane.b32.xlu0 %v403, 2
          %v424 = vpop.permute.xlu0 %423
          %425 = vrot.lane.b32.xlu0 %v404, 2
          %v426 = vpop.permute.xlu0 %425
          %427 = vrot.lane.b32.xlu0 %v405, 2
          %v428 = vpop.permute.xlu0 %427
          %429 = vrot.lane.b32.xlu0 %v406, 2
          %v430 = vpop.permute.xlu0 %429
          %s439 = sadd.s32 %s369, 192
          %s440 = scalar_lea.vmem %s150, %s439
          %vm441 = vcmask 146448
          %442 = vst.msk [vmem:[%s440] sm:$0xff] %vm441, %v416
          %443 = vst.msk [vmem:[%s440 + $0x8] sm:$0xff] %vm441, %v418
          %444 = vst.msk [vmem:[%s440 + $0x18] sm:$0xff] %vm441, %v420
          %445 = vst.msk [vmem:[%s440 + $0x20] sm:$0xff] %vm441, %v422
          %446 = vst.msk [vmem:[%s440 + $0x30] sm:$0xff] %vm441, %v424
          %447 = vst.msk [vmem:[%s440 + $0x38] sm:$0xff] %vm441, %v426
          %448 = vst.msk [vmem:[%s440 + $0x48] sm:$0xff] %vm441, %v428
          %449 = vst.msk [vmem:[%s440 + $0x50] sm:$0xff] %vm441, %v430
        $region52: #{tpu_custom_call.1} parent=23 // pred_fallthru
          _
        %s450 = sadd.s32 %s202, 3
        %s451 = sld [smem:[#allocation3 + %s450]]
        %s452 = sld [smem:[#allocation4 + %s450]]
        %s453 = smul.u32 %s452, 2
        %p454 = scmp.eq.s32.totalorder %s451, 0
        // Predicated region
        $region53: #{tpu_custom_call.1} parent=23 // pred_check
          %p455 = pneg %p454
        $region54: #{tpu_custom_call.1} parent=23 // pred_check_branch
          %457 = sbr.rel (%p455) target = $region56
        $region55: #{tpu_custom_call.1} parent=23 // pred_region
          %s458 = scalar_lea.vmem %s124, 192 [#allocation5]
          %v459 = vld [vmem:[%s458] sm:$0xff]
          %v460 = vld [vmem:[%s458 + $0x8] sm:$0xff]
          %v461 = vld [vmem:[%s458 + $0x10] sm:$0xff]
          %v462 = vld [vmem:[%s458 + $0x18] sm:$0xff]
          %v463 = vld [vmem:[%s458 + $0x20] sm:$0xff]
          %v464 = vld [vmem:[%s458 + $0x28] sm:$0xff]
          %v465 = vld [vmem:[%s458 + $0x30] sm:$0xff]
          %v466 = vld [vmem:[%s458 + $0x38] sm:$0xff]
          %s467 = sadd.s32 %s453, 288
          %s468 = scalar_lea.vmem %s150, %s467
          %vm469 = vcmask 130048
          %470 = vst.msk [vmem:[%s468] sm:$0xff] %vm469, %v459
          %471 = vst.msk [vmem:[%s468 + $0x8] sm:$0xff] %vm469, %v460
          %472 = vst.msk [vmem:[%s468 + $0x18] sm:$0xff] %vm469, %v461
          %473 = vst.msk [vmem:[%s468 + $0x20] sm:$0xff] %vm469, %v462
          %474 = vst.msk [vmem:[%s468 + $0x30] sm:$0xff] %vm469, %v463
          %475 = vst.msk [vmem:[%s468 + $0x38] sm:$0xff] %vm469, %v464
          %476 = vst.msk [vmem:[%s468 + $0x48] sm:$0xff] %vm469, %v465
          %477 = vst.msk [vmem:[%s468 + $0x50] sm:$0xff] %vm469, %v466
        $region56: #{tpu_custom_call.1} parent=23 // pred_fallthru
          _
        %p478 = scmp.eq.s32.totalorder %s451, 1
        // Predicated region
        $region57: #{tpu_custom_call.1} parent=23 // pred_check
          %p479 = pneg %p478
        $region58: #{tpu_custom_call.1} parent=23 // pred_check_branch
          %481 = sbr.rel (%p479) target = $region60
        $region59: #{tpu_custom_call.1} parent=23 // pred_region
          %s482 = scalar_lea.vmem %s124, 192 [#allocation5]
          %v483 = vld [vmem:[%s482] sm:$0xff]
          %v484 = vld [vmem:[%s482 + $0x8] sm:$0xff]
          %v485 = vld [vmem:[%s482 + $0x10] sm:$0xff]
          %v486 = vld [vmem:[%s482 + $0x18] sm:$0xff]
          %v487 = vld [vmem:[%s482 + $0x20] sm:$0xff]
          %v488 = vld [vmem:[%s482 + $0x28] sm:$0xff]
          %v489 = vld [vmem:[%s482 + $0x30] sm:$0xff]
          %v490 = vld [vmem:[%s482 + $0x38] sm:$0xff]
          %499 = vrot.lane.b32.xlu0 %v483, 2
          %v500 = vpop.permute.xlu0 %499
          %501 = vrot.lane.b32.xlu0 %v484, 2
          %v502 = vpop.permute.xlu0 %501
          %503 = vrot.lane.b32.xlu0 %v485, 2
          %v504 = vpop.permute.xlu0 %503
          %505 = vrot.lane.b32.xlu0 %v486, 2
          %v506 = vpop.permute.xlu0 %505
          %507 = vrot.lane.b32.xlu0 %v487, 2
          %v508 = vpop.permute.xlu0 %507
          %509 = vrot.lane.b32.xlu0 %v488, 2
          %v510 = vpop.permute.xlu0 %509
          %511 = vrot.lane.b32.xlu0 %v489, 2
          %v512 = vpop.permute.xlu0 %511
          %513 = vrot.lane.b32.xlu0 %v490, 2
          %v514 = vpop.permute.xlu0 %513
          %s523 = sadd.s32 %s453, 288
          %s524 = scalar_lea.vmem %s150, %s523
          %vm525 = vcmask 146448
          %526 = vst.msk [vmem:[%s524] sm:$0xff] %vm525, %v500
          %527 = vst.msk [vmem:[%s524 + $0x8] sm:$0xff] %vm525, %v502
          %528 = vst.msk [vmem:[%s524 + $0x18] sm:$0xff] %vm525, %v504
          %529 = vst.msk [vmem:[%s524 + $0x20] sm:$0xff] %vm525, %v506
          %530 = vst.msk [vmem:[%s524 + $0x30] sm:$0xff] %vm525, %v508
          %531 = vst.msk [vmem:[%s524 + $0x38] sm:$0xff] %vm525, %v510
          %532 = vst.msk [vmem:[%s524 + $0x48] sm:$0xff] %vm525, %v512
          %533 = vst.msk [vmem:[%s524 + $0x50] sm:$0xff] %vm525, %v514
        $region60: #{tpu_custom_call.1} parent=23 // pred_fallthru
          _
        %s534 = smul.u32 4, %s25
        %p535 = scmp.lt.s32.totalorder %s534, 7
        %s536 = scalar_select %p535, %s534, 7
        %s537 = smul.addr %s536, 12
        %s538 = smul.addr %s537, 8
        %s539 = scalar_lea.vmem %s3, %s538
        // Predicated region
        $region61: #{tpu_custom_call.1} parent=23 // pred_check
          %p540 = pneg %p69
        $region62: #{tpu_custom_call.1} parent=23 // pred_check_branch
          %542 = sbr.rel (%p540) target = $region64
        $region63: #{tpu_custom_call.1} parent=23 // pred_region
          %s543 = smul.u32 4, %s25
        $region64: #{tpu_custom_call.1} parent=23 // pred_fallthru
          _
      $region24: #{tpu_custom_call.1} parent=5 // pred_fallthru
        _
      %p544 = scmp.le.s32.totalorder 2, %s20
      // Predicated region
      $region65: #{tpu_custom_call.1} parent=5 // pred_check
        %p545 = pneg %p544
      $region66: #{tpu_custom_call.1} parent=5 // pred_check_branch
        %547 = sbr.rel (%p545) target = $region68
      $region67: #{tpu_custom_call.1} parent=5 // pred_region
        %s548 = ssub.s32 %s20, 2
        // Predicated region
        $region69: #{tpu_custom_call.1} parent=67 // pred_check
          %p549 = pneg %p75
        $region70: #{tpu_custom_call.1} parent=67 // pred_check_branch
          %551 = sbr.rel (%p549) target = $region72
        $region71: #{tpu_custom_call.1} parent=67 // pred_region
          %s552 = smul.u32 4, %s26
          %p553 = scmp.lt.s32.totalorder %s552, 7
          %s554 = scalar_select %p553, %s552, 7
          %s555 = smul.addr %s554, 12
          %s556 = smul.addr %s555, 8
          %s557 = scalar_lea.vmem %s3, %s556
        $region72: #{tpu_custom_call.1} parent=67 // pred_fallthru
          _
      $region68: #{tpu_custom_call.1} parent=5 // pred_fallthru
        _
    $region6: #{tpu_custom_call.1} parent=1 // loop_footer
      %s24 = sadd.s32 1, %s20
    $region7: #{tpu_custom_call.1} parent=1 // loop_footer_branch
      %19 = sbr.rel target = $region3
    $region8: #{tpu_custom_call.1} parent=1 // loop_exit
      _
    %558 = vsyncpa [#allocation6], 1
    %s559 = scalar_lea.sflag [#allocation6], 1
    %560 = vsyncpa %s559, 1

</llo_original>
